<compile_context>
chip_gen: v7x
topology: tpu7x:2x2x1
jax: 0.10.0
libtpu: 0.0.40
codegen_flags: <defaults>
</compile_context>

<pallas_src>
import jax
import jax.numpy as jnp
from jax import lax
from jax.experimental import pallas as pl
from jax.experimental.pallas import tpu as pltpu


def model_my_kernel(ids_ref, mask_ref, table_ref, w_ref, b_ref, out_ref, pooled_acc):
    k = pl.program_id(0)
    S, Bp, _ = ids_ref.shape          # ids/mask passed as (S, Bp, 1): S on leading axis
    TV = table_ref.shape[0]

    @pl.when(k == 0)
    def _init():
        pooled_acc[...] = jnp.zeros_like(pooled_acc)

    inv_s = 1.0 / S                                    # folds torch's mean(dim=1)
    v_base = k * TV
    vocab_iota = lax.broadcasted_iota(jnp.int32, (Bp, TV), 1) + v_base   # (Bp, TV)

    # counts[b, v] = sum_s [ids[b,s] == v] * mask[b,s] / S, accumulated over S with a
    # (Bp, TV)-sized live accumulator (no (B,S,V) intermediate).
    def body(s, counts):
        id_col = ids_ref[s]                            # (Bp, 1) int32
        m_col = mask_ref[s] * inv_s                    # (Bp, 1) f32
        return counts + jnp.where(vocab_iota == id_col, m_col, 0.0)

    counts = lax.fori_loop(0, S, body,
                           jnp.zeros((Bp, TV), jnp.float32), unroll=True)

    # pooled += counts @ table_chunk : bf16 MXU operands, f32 accumulation.
    pooled_acc[...] += jnp.dot(counts.astype(jnp.bfloat16), table_ref[...],
                               preferred_element_type=jnp.float32)

    @pl.when(k == pl.num_programs(0) - 1)
    def _finalize():
        out_ref[...] = (jnp.dot(pooled_acc[...].astype(jnp.bfloat16), w_ref[...],
                                preferred_element_type=jnp.float32)
                        + b_ref[...])                  # (Bp, Cp) lane-dense store


def _round_up(x, m):
    return ((x + m - 1) // m) * m


def prepare_params(emb_table, fc_weight, fc_bias):
    """One-time (init-time) padding + bf16 conversion of the model parameters.

    emb_table: [V, E] f32, fc_weight: [C, E] (PyTorch layout), fc_bias: [C] f32.
    """
    V, E = emb_table.shape
    C = fc_weight.shape[0]
    LANE = 128
    Ep = _round_up(E, LANE)
    Cp = _round_up(C, LANE)
    TV = min(512, _round_up(V, LANE))      # table rows per grid step
    Vp = _round_up(V, TV)

    table_p = jnp.zeros((Vp, Ep), jnp.bfloat16).at[:V, :E].set(
        emb_table.astype(jnp.bfloat16))
    w_p = jnp.zeros((Ep, Cp), jnp.bfloat16).at[:E, :C].set(
        fc_weight.astype(jnp.bfloat16).T)              # pre-transposed (Ep, Cp)
    b_p = jnp.zeros((1, Cp), jnp.float32).at[0, :C].set(
        fc_bias.astype(jnp.float32))
    dims = dict(V=V, E=E, C=C, Vp=Vp, Ep=Ep, Cp=Cp, TV=TV)
    return dict(table=table_p, w=w_p, b=b_p, dims=dims)


def model_my_forward(params, input_ids, mask):
    """input_ids: [B, S] int, mask: [B, S] f32. Returns [B, C] f32."""
    d = params["dims"]
    Vp, Ep, Cp, TV, C = d["Vp"], d["Ep"], d["Cp"], d["TV"], d["C"]
    B, S = input_ids.shape
    Bp = _round_up(B, 8)                               # sublane-aligned batch

    # Per-call prep (tiny): pad B with zero-mask rows, put S on the leading (non-tiled)
    # axis so the kernel's per-step load is a well-supported ref[s] index.
    ids_p = jnp.zeros((Bp, S), jnp.int32).at[:B].set(input_ids.astype(jnp.int32))
    mask_p = jnp.zeros((Bp, S), jnp.float32).at[:B].set(mask.astype(jnp.float32))
    ids_slb = ids_p.T[:, :, None]                      # (S, Bp, 1)
    mask_slb = mask_p.T[:, :, None]                    # (S, Bp, 1)

    n_chunks = Vp // TV

    # Scoped-VMEM budget: double-buffered bf16 table chunk dominates.
    vmem_bytes = (2 * TV * Ep * 2 + Ep * Cp * 2 + Cp * 4 * 8
                  + 2 * S * Bp * 128 * 4               # ids + mask (lane-padded)
                  + Bp * Ep * 4 + 2 * Bp * Cp * 4)
    vmem_limit = int(min(64 << 20, 2 * vmem_bytes + (4 << 20)))

    cost = pl.CostEstimate(
        flops=2 * Bp * Vp * Ep + 2 * Bp * Ep * Cp,
        transcendentals=0,
        bytes_accessed=Vp * Ep * 2 + Ep * Cp * 2 + 2 * Bp * S * 4 + Bp * Cp * 4,
    )

    out_p = pl.pallas_call(
        model_my_kernel,
        out_shape=jax.ShapeDtypeStruct((Bp, Cp), jnp.float32),
        grid_spec=pltpu.PrefetchScalarGridSpec(
            num_scalar_prefetch=0,
            grid=(n_chunks,),
            in_specs=[
                pl.BlockSpec((S, Bp, 1), lambda k: (0, 0, 0)),   # ids     (S, Bp, 1)
                pl.BlockSpec((S, Bp, 1), lambda k: (0, 0, 0)),   # mask    (S, Bp, 1)
                pl.BlockSpec((TV, Ep), lambda k: (k, 0)),        # table chunk (bf16)
                pl.BlockSpec((Ep, Cp), lambda k: (0, 0)),        # fc weight   (bf16)
                pl.BlockSpec((1, Cp), lambda k: (0, 0)),         # fc bias     (f32)
            ],
            out_specs=pl.BlockSpec((Bp, Cp), lambda k: (0, 0)),
            scratch_shapes=[pltpu.VMEM((Bp, Ep), jnp.float32)],  # pooled accumulator
        ),
        compiler_params=pltpu.CompilerParams(
            dimension_semantics=("arbitrary",),        # vocab axis is a reduction
            vmem_limit_bytes=vmem_limit,
        ),
        cost_estimate=cost,
    )(ids_slb, mask_slb, params["table"], params["w"], params["b"])

    return out_p[:B, :C]


if __name__ == "__main__":
    # Small shapes consistent with the module.
    B, S = 2, 8          # batch, sequence length
    V, E, C = 64, 32, 4  # vocab_size, embedding_size, num_classes

    key = jax.random.PRNGKey(0)
    k_ids, k_mask, k_emb, k_w, k_b = jax.random.split(key, 5)

    input_ids = jax.random.randint(k_ids, (B, S), 0, V, dtype=jnp.int32)
    mask = (jax.random.uniform(k_mask, (B, S)) > 0.3).astype(jnp.float32)

    # Deterministic parameter init (synthetic; not a checkpoint load).
    emb_table = jax.random.normal(k_emb, (V, E), dtype=jnp.float32)
    fc_weight = jax.random.normal(k_w, (C, E), dtype=jnp.float32) * (1.0 / jnp.sqrt(E))
    fc_bias = jax.random.normal(k_b, (C,), dtype=jnp.float32) * 0.01

    params = prepare_params(emb_table, fc_weight, fc_bias)   # one-time init-time cost
    out = model_my_forward(params, input_ids, mask)
    out = jax.block_until_ready(out)

    # Pure-JAX f32 reference of the PyTorch forward.
    emb = jnp.take(emb_table, input_ids, axis=0)             # (B, S, E)
    pooled = jnp.mean(emb * mask[:, :, None], axis=1)        # (B, E)
    ref = pooled @ fc_weight.T + fc_bias                     # (B, C)
    assert out.shape == (B, C)
    # bf16 weights / matmul operands -> loosened tolerance vs the f32 reference.
    assert jnp.allclose(out, ref, atol=5e-2, rtol=5e-2), (out, ref)

    print("KERNEL_OK")
</pallas_src>

<mosaic_0001>
module attributes {stable_mosaic.version = 11 : i64} {
  func.func @model_my_kernel(%arg0: i32, %arg1: memref<8x8x1xi32, #tpu.memory_space<vmem>>, %arg2: memref<8x8x1xf32, #tpu.memory_space<vmem>>, %arg3: memref<128x128xbf16, #tpu.memory_space<vmem>>, %arg4: memref<128x128xbf16, #tpu.memory_space<vmem>>, %arg5: memref<1x128xf32, #tpu.memory_space<vmem>>, %arg6: memref<8x128xf32, #tpu.memory_space<vmem>>, %arg7: memref<8x128xf32, #tpu.memory_space<vmem>>) attributes {dimension_semantics = [#tpu.dimension_semantics<arbitrary>], iteration_bounds = array<i64: 1>, scalar_prefetch = 0 : i64, scratch_operands = 1 : i64, tpu.core_type = #tpu.core_type<tc>, window_params = [{pipeline_mode = #tpu.pipeline_mode<synchronous>, transform_indices = @transform_0, window_bounds = array<i64: 8, 8, 1>}, {pipeline_mode = #tpu.pipeline_mode<synchronous>, transform_indices = @transform_1, window_bounds = array<i64: 8, 8, 1>}, {transform_indices = @transform_2, window_bounds = array<i64: 128, 128>}, {pipeline_mode = #tpu.pipeline_mode<synchronous>, transform_indices = @transform_3, window_bounds = array<i64: 128, 128>}, {pipeline_mode = #tpu.pipeline_mode<synchronous>, transform_indices = @transform_4, window_bounds = array<i64: 1, 128>}, {pipeline_mode = #tpu.pipeline_mode<synchronous>, transform_indices = @transform_5, window_bounds = array<i64: 8, 128>}]} {
    %c0_i32 = arith.constant 0 : i32
    %0 = arith.cmpi eq, %arg0, %c0_i32 : i32
    %1 = arith.extui %0 : i1 to i32
    %c0_i32_0 = arith.constant 0 : i32
    %2 = arith.cmpi ne, %1, %c0_i32_0 : i32
    scf.if %2 {
      %cst_58 = arith.constant 0.000000e+00 : f32
      %137 = vector.broadcast %cst_58 : f32 to vector<8x128xf32>
      %c0_59 = arith.constant 0 : index
      %c0_60 = arith.constant 0 : index
      %138 = vector.load %arg7[%c0_59, %c0_60] : memref<8x128xf32, #tpu.memory_space<vmem>>, vector<8x128xf32>
      tpu.vector_store %arg7[%c0_59, %c0_60], %137 {strides = array<i32>} : memref<8x128xf32, #tpu.memory_space<vmem>>, vector<8x128xf32>,
    } else {
    }
    %c128_i32 = arith.constant 128 : i32
    %3 = arith.muli %arg0, %c128_i32 : i32
    %4 = tpu.iota {dimensions = array<i32: 1>} : vector<8x128xi32>
    %5 = vector.broadcast %3 : i32 to vector<8x128xi32>
    %6 = arith.addi %4, %5 : vector<8x128xi32>
    %cst = arith.constant 0.000000e+00 : f32
    %7 = vector.broadcast %cst : f32 to vector<8x128xf32>
    %c0_i32_1 = arith.constant 0 : i32
    %8 = arith.index_cast %c0_i32_1 : i32 to index
    %c0 = arith.constant 0 : index
    %c0_2 = arith.constant 0 : index
    %9 = vector.load %arg1[%8, %c0, %c0_2] : memref<8x8x1xi32, #tpu.memory_space<vmem>>, vector<1x8x1xi32>
    %10 = vector.shape_cast %9 : vector<1x8x1xi32> to vector<8x1xi32>
    %11 = arith.index_cast %c0_i32_1 : i32 to index
    %c0_3 = arith.constant 0 : index
    %c0_4 = arith.constant 0 : index
    %12 = vector.load %arg2[%11, %c0_3, %c0_4] : memref<8x8x1xf32, #tpu.memory_space<vmem>>, vector<1x8x1xf32>
    %13 = vector.shape_cast %12 : vector<1x8x1xf32> to vector<8x1xf32>
    %cst_5 = arith.constant 1.250000e-01 : f32
    %14 = vector.broadcast %cst_5 : f32 to vector<8x1xf32>
    %15 = arith.mulf %13, %14 : vector<8x1xf32>
    %16 = vector.broadcast %10 : vector<8x1xi32> to vector<8x128xi32>
    %17 = arith.cmpi eq, %6, %16 : vector<8x128xi32>
    %cst_6 = arith.constant 0.000000e+00 : f32
    %18 = vector.shape_cast %15 : vector<8x1xf32> to vector<8x1xf32>
    %19 = vector.broadcast %18 : vector<8x1xf32> to vector<8x128xf32>
    %20 = vector.broadcast %cst_6 : f32 to vector<8x128xf32>
    %21 = arith.select %17, %19, %20 : vector<8x128xi1>, vector<8x128xf32>
    %22 = arith.addf %7, %21 : vector<8x128xf32>
    %c1_i32 = arith.constant 1 : i32
    %23 = arith.index_cast %c1_i32 : i32 to index
    %c0_7 = arith.constant 0 : index
    %c0_8 = arith.constant 0 : index
    %24 = vector.load %arg1[%23, %c0_7, %c0_8] : memref<8x8x1xi32, #tpu.memory_space<vmem>>, vector<1x8x1xi32>
    %25 = vector.shape_cast %24 : vector<1x8x1xi32> to vector<8x1xi32>
    %26 = arith.index_cast %c1_i32 : i32 to index
    %c0_9 = arith.constant 0 : index
    %c0_10 = arith.constant 0 : index
    %27 = vector.load %arg2[%26, %c0_9, %c0_10] : memref<8x8x1xf32, #tpu.memory_space<vmem>>, vector<1x8x1xf32>
    %28 = vector.shape_cast %27 : vector<1x8x1xf32> to vector<8x1xf32>
    %cst_11 = arith.constant 1.250000e-01 : f32
    %29 = vector.broadcast %cst_11 : f32 to vector<8x1xf32>
    %30 = arith.mulf %28, %29 : vector<8x1xf32>
    %31 = vector.broadcast %25 : vector<8x1xi32> to vector<8x128xi32>
    %32 = arith.cmpi eq, %6, %31 : vector<8x128xi32>
    %cst_12 = arith.constant 0.000000e+00 : f32
    %33 = vector.shape_cast %30 : vector<8x1xf32> to vector<8x1xf32>
    %34 = vector.broadcast %33 : vector<8x1xf32> to vector<8x128xf32>
    %35 = vector.broadcast %cst_12 : f32 to vector<8x128xf32>
    %36 = arith.select %32, %34, %35 : vector<8x128xi1>, vector<8x128xf32>
    %37 = arith.addf %22, %36 : vector<8x128xf32>
    %c2_i32 = arith.constant 2 : i32
    %38 = arith.index_cast %c2_i32 : i32 to index
    %c0_13 = arith.constant 0 : index
    %c0_14 = arith.constant 0 : index
    %39 = vector.load %arg1[%38, %c0_13, %c0_14] : memref<8x8x1xi32, #tpu.memory_space<vmem>>, vector<1x8x1xi32>
    %40 = vector.shape_cast %39 : vector<1x8x1xi32> to vector<8x1xi32>
    %41 = arith.index_cast %c2_i32 : i32 to index
    %c0_15 = arith.constant 0 : index
    %c0_16 = arith.constant 0 : index
    %42 = vector.load %arg2[%41, %c0_15, %c0_16] : memref<8x8x1xf32, #tpu.memory_space<vmem>>, vector<1x8x1xf32>
    %43 = vector.shape_cast %42 : vector<1x8x1xf32> to vector<8x1xf32>
    %cst_17 = arith.constant 1.250000e-01 : f32
    %44 = vector.broadcast %cst_17 : f32 to vector<8x1xf32>
    %45 = arith.mulf %43, %44 : vector<8x1xf32>
    %46 = vector.broadcast %40 : vector<8x1xi32> to vector<8x128xi32>
    %47 = arith.cmpi eq, %6, %46 : vector<8x128xi32>
    %cst_18 = arith.constant 0.000000e+00 : f32
    %48 = vector.shape_cast %45 : vector<8x1xf32> to vector<8x1xf32>
    %49 = vector.broadcast %48 : vector<8x1xf32> to vector<8x128xf32>
    %50 = vector.broadcast %cst_18 : f32 to vector<8x128xf32>
    %51 = arith.select %47, %49, %50 : vector<8x128xi1>, vector<8x128xf32>
    %52 = arith.addf %37, %51 : vector<8x128xf32>
    %c3_i32 = arith.constant 3 : i32
    %53 = arith.index_cast %c3_i32 : i32 to index
    %c0_19 = arith.constant 0 : index
    %c0_20 = arith.constant 0 : index
    %54 = vector.load %arg1[%53, %c0_19, %c0_20] : memref<8x8x1xi32, #tpu.memory_space<vmem>>, vector<1x8x1xi32>
    %55 = vector.shape_cast %54 : vector<1x8x1xi32> to vector<8x1xi32>
    %56 = arith.index_cast %c3_i32 : i32 to index
    %c0_21 = arith.constant 0 : index
    %c0_22 = arith.constant 0 : index
    %57 = vector.load %arg2[%56, %c0_21, %c0_22] : memref<8x8x1xf32, #tpu.memory_space<vmem>>, vector<1x8x1xf32>
    %58 = vector.shape_cast %57 : vector<1x8x1xf32> to vector<8x1xf32>
    %cst_23 = arith.constant 1.250000e-01 : f32
    %59 = vector.broadcast %cst_23 : f32 to vector<8x1xf32>
    %60 = arith.mulf %58, %59 : vector<8x1xf32>
    %61 = vector.broadcast %55 : vector<8x1xi32> to vector<8x128xi32>
    %62 = arith.cmpi eq, %6, %61 : vector<8x128xi32>
    %cst_24 = arith.constant 0.000000e+00 : f32
    %63 = vector.shape_cast %60 : vector<8x1xf32> to vector<8x1xf32>
    %64 = vector.broadcast %63 : vector<8x1xf32> to vector<8x128xf32>
    %65 = vector.broadcast %cst_24 : f32 to vector<8x128xf32>
    %66 = arith.select %62, %64, %65 : vector<8x128xi1>, vector<8x128xf32>
    %67 = arith.addf %52, %66 : vector<8x128xf32>
    %c4_i32 = arith.constant 4 : i32
    %68 = arith.index_cast %c4_i32 : i32 to index
    %c0_25 = arith.constant 0 : index
    %c0_26 = arith.constant 0 : index
    %69 = vector.load %arg1[%68, %c0_25, %c0_26] : memref<8x8x1xi32, #tpu.memory_space<vmem>>, vector<1x8x1xi32>
    %70 = vector.shape_cast %69 : vector<1x8x1xi32> to vector<8x1xi32>
    %71 = arith.index_cast %c4_i32 : i32 to index
    %c0_27 = arith.constant 0 : index
    %c0_28 = arith.constant 0 : index
    %72 = vector.load %arg2[%71, %c0_27, %c0_28] : memref<8x8x1xf32, #tpu.memory_space<vmem>>, vector<1x8x1xf32>
    %73 = vector.shape_cast %72 : vector<1x8x1xf32> to vector<8x1xf32>
    %cst_29 = arith.constant 1.250000e-01 : f32
    %74 = vector.broadcast %cst_29 : f32 to vector<8x1xf32>
    %75 = arith.mulf %73, %74 : vector<8x1xf32>
    %76 = vector.broadcast %70 : vector<8x1xi32> to vector<8x128xi32>
    %77 = arith.cmpi eq, %6, %76 : vector<8x128xi32>
    %cst_30 = arith.constant 0.000000e+00 : f32
    %78 = vector.shape_cast %75 : vector<8x1xf32> to vector<8x1xf32>
    %79 = vector.broadcast %78 : vector<8x1xf32> to vector<8x128xf32>
    %80 = vector.broadcast %cst_30 : f32 to vector<8x128xf32>
    %81 = arith.select %77, %79, %80 : vector<8x128xi1>, vector<8x128xf32>
    %82 = arith.addf %67, %81 : vector<8x128xf32>
    %c5_i32 = arith.constant 5 : i32
    %83 = arith.index_cast %c5_i32 : i32 to index
    %c0_31 = arith.constant 0 : index
    %c0_32 = arith.constant 0 : index
    %84 = vector.load %arg1[%83, %c0_31, %c0_32] : memref<8x8x1xi32, #tpu.memory_space<vmem>>, vector<1x8x1xi32>
    %85 = vector.shape_cast %84 : vector<1x8x1xi32> to vector<8x1xi32>
    %86 = arith.index_cast %c5_i32 : i32 to index
    %c0_33 = arith.constant 0 : index
    %c0_34 = arith.constant 0 : index
    %87 = vector.load %arg2[%86, %c0_33, %c0_34] : memref<8x8x1xf32, #tpu.memory_space<vmem>>, vector<1x8x1xf32>
    %88 = vector.shape_cast %87 : vector<1x8x1xf32> to vector<8x1xf32>
    %cst_35 = arith.constant 1.250000e-01 : f32
    %89 = vector.broadcast %cst_35 : f32 to vector<8x1xf32>
    %90 = arith.mulf %88, %89 : vector<8x1xf32>
    %91 = vector.broadcast %85 : vector<8x1xi32> to vector<8x128xi32>
    %92 = arith.cmpi eq, %6, %91 : vector<8x128xi32>
    %cst_36 = arith.constant 0.000000e+00 : f32
    %93 = vector.shape_cast %90 : vector<8x1xf32> to vector<8x1xf32>
    %94 = vector.broadcast %93 : vector<8x1xf32> to vector<8x128xf32>
    %95 = vector.broadcast %cst_36 : f32 to vector<8x128xf32>
    %96 = arith.select %92, %94, %95 : vector<8x128xi1>, vector<8x128xf32>
    %97 = arith.addf %82, %96 : vector<8x128xf32>
    %c6_i32 = arith.constant 6 : i32
    %98 = arith.index_cast %c6_i32 : i32 to index
    %c0_37 = arith.constant 0 : index
    %c0_38 = arith.constant 0 : index
    %99 = vector.load %arg1[%98, %c0_37, %c0_38] : memref<8x8x1xi32, #tpu.memory_space<vmem>>, vector<1x8x1xi32>
    %100 = vector.shape_cast %99 : vector<1x8x1xi32> to vector<8x1xi32>
    %101 = arith.index_cast %c6_i32 : i32 to index
    %c0_39 = arith.constant 0 : index
    %c0_40 = arith.constant 0 : index
    %102 = vector.load %arg2[%101, %c0_39, %c0_40] : memref<8x8x1xf32, #tpu.memory_space<vmem>>, vector<1x8x1xf32>
    %103 = vector.shape_cast %102 : vector<1x8x1xf32> to vector<8x1xf32>
    %cst_41 = arith.constant 1.250000e-01 : f32
    %104 = vector.broadcast %cst_41 : f32 to vector<8x1xf32>
    %105 = arith.mulf %103, %104 : vector<8x1xf32>
    %106 = vector.broadcast %100 : vector<8x1xi32> to vector<8x128xi32>
    %107 = arith.cmpi eq, %6, %106 : vector<8x128xi32>
    %cst_42 = arith.constant 0.000000e+00 : f32
    %108 = vector.shape_cast %105 : vector<8x1xf32> to vector<8x1xf32>
    %109 = vector.broadcast %108 : vector<8x1xf32> to vector<8x128xf32>
    %110 = vector.broadcast %cst_42 : f32 to vector<8x128xf32>
    %111 = arith.select %107, %109, %110 : vector<8x128xi1>, vector<8x128xf32>
    %112 = arith.addf %97, %111 : vector<8x128xf32>
    %c7_i32 = arith.constant 7 : i32
    %113 = arith.index_cast %c7_i32 : i32 to index
    %c0_43 = arith.constant 0 : index
    %c0_44 = arith.constant 0 : index
    %114 = vector.load %arg1[%113, %c0_43, %c0_44] : memref<8x8x1xi32, #tpu.memory_space<vmem>>, vector<1x8x1xi32>
    %115 = vector.shape_cast %114 : vector<1x8x1xi32> to vector<8x1xi32>
    %116 = arith.index_cast %c7_i32 : i32 to index
    %c0_45 = arith.constant 0 : index
    %c0_46 = arith.constant 0 : index
    %117 = vector.load %arg2[%116, %c0_45, %c0_46] : memref<8x8x1xf32, #tpu.memory_space<vmem>>, vector<1x8x1xf32>
    %118 = vector.shape_cast %117 : vector<1x8x1xf32> to vector<8x1xf32>
    %cst_47 = arith.constant 1.250000e-01 : f32
    %119 = vector.broadcast %cst_47 : f32 to vector<8x1xf32>
    %120 = arith.mulf %118, %119 : vector<8x1xf32>
    %121 = vector.broadcast %115 : vector<8x1xi32> to vector<8x128xi32>
    %122 = arith.cmpi eq, %6, %121 : vector<8x128xi32>
    %cst_48 = arith.constant 0.000000e+00 : f32
    %123 = vector.shape_cast %120 : vector<8x1xf32> to vector<8x1xf32>
    %124 = vector.broadcast %123 : vector<8x1xf32> to vector<8x128xf32>
    %125 = vector.broadcast %cst_48 : f32 to vector<8x128xf32>
    %126 = arith.select %122, %124, %125 : vector<8x128xi1>, vector<8x128xf32>
    %127 = arith.addf %112, %126 : vector<8x128xf32>
    %c8_i32 = arith.constant 8 : i32
    %c0_49 = arith.constant 0 : index
    %c0_50 = arith.constant 0 : index
    %128 = vector.load %arg7[%c0_49, %c0_50] : memref<8x128xf32, #tpu.memory_space<vmem>>, vector<8x128xf32>
    %129 = arith.truncf %127 : vector<8x128xf32> to vector<8x128xbf16>
    %c0_51 = arith.constant 0 : index
    %c0_52 = arith.constant 0 : index
    %130 = vector.load %arg3[%c0_51, %c0_52] : memref<128x128xbf16, #tpu.memory_space<vmem>>, vector<128x128xbf16>
    %cst_53 = arith.constant dense<0.000000e+00> : vector<8x128xf32>
    %131 = tpu.matmul %129, %130, %cst_53 {dimension_numbers = #tpu.dot_dimension_numbers<[1], [0], [0], [1], [0, 0, 1, 1], [], []>} : vector<8x128xbf16>, vector<128x128xbf16>, vector<8x128xf32> -> vector<8x128xf32>
    %132 = arith.addf %128, %131 : vector<8x128xf32>
    %c0_54 = arith.constant 0 : index
    %c0_55 = arith.constant 0 : index
    %133 = vector.load %arg7[%c0_54, %c0_55] : memref<8x128xf32, #tpu.memory_space<vmem>>, vector<8x128xf32>
    tpu.vector_store %arg7[%c0_54, %c0_55], %132 {strides = array<i32>} : memref<8x128xf32, #tpu.memory_space<vmem>>, vector<8x128xf32>,
    %c0_i32_56 = arith.constant 0 : i32
    %134 = arith.cmpi eq, %arg0, %c0_i32_56 : i32
    %135 = arith.extui %134 : i1 to i32
    %c0_i32_57 = arith.constant 0 : i32
    %136 = arith.cmpi ne, %135, %c0_i32_57 : i32
    scf.if %136 {
      %c0_58 = arith.constant 0 : index
      %c0_59 = arith.constant 0 : index
      %137 = vector.load %arg7[%c0_58, %c0_59] : memref<8x128xf32, #tpu.memory_space<vmem>>, vector<8x128xf32>
      %138 = arith.truncf %137 : vector<8x128xf32> to vector<8x128xbf16>
      %c0_60 = arith.constant 0 : index
      %c0_61 = arith.constant 0 : index
      %139 = vector.load %arg4[%c0_60, %c0_61] : memref<128x128xbf16, #tpu.memory_space<vmem>>, vector<128x128xbf16>
      %cst_62 = arith.constant dense<0.000000e+00> : vector<8x128xf32>
      %140 = tpu.matmul %138, %139, %cst_62 {dimension_numbers = #tpu.dot_dimension_numbers<[1], [0], [0], [1], [0, 0, 1, 1], [], []>} : vector<8x128xbf16>, vector<128x128xbf16>, vector<8x128xf32> -> vector<8x128xf32>
      %c0_63 = arith.constant 0 : index
      %c0_64 = arith.constant 0 : index
      %141 = vector.load %arg5[%c0_63, %c0_64] : memref<1x128xf32, #tpu.memory_space<vmem>>, vector<1x128xf32>
      %142 = vector.broadcast %141 : vector<1x128xf32> to vector<8x128xf32>
      %143 = arith.addf %140, %142 : vector<8x128xf32>
      %c0_65 = arith.constant 0 : index
      %c0_66 = arith.constant 0 : index
      %144 = vector.load %arg6[%c0_65, %c0_66] : memref<8x128xf32, #tpu.memory_space<vmem>>, vector<8x128xf32>
      tpu.vector_store %arg6[%c0_65, %c0_66], %143 {strides = array<i32>} : memref<8x128xf32, #tpu.memory_space<vmem>>, vector<8x128xf32>,
    } else {
    }
    return
  }
  func.func @transform_0(%arg0: i32) -> (i32, i32, i32) {
    %c0_i32 = arith.constant 0 : i32
    %c0_i32_0 = arith.constant 0 : i32
    %c0_i32_1 = arith.constant 0 : i32
    %c0_i32_2 = arith.constant 0 : i32
    return %c0_i32, %c0_i32_0, %c0_i32_1 : i32, i32, i32
  }
  func.func @transform_1(%arg0: i32) -> (i32, i32, i32) {
    %c0_i32 = arith.constant 0 : i32
    %c0_i32_0 = arith.constant 0 : i32
    %c0_i32_1 = arith.constant 0 : i32
    %c0_i32_2 = arith.constant 0 : i32
    return %c0_i32, %c0_i32_0, %c0_i32_1 : i32, i32, i32
  }
  func.func @transform_2(%arg0: i32) -> (i32, i32) {
    %c0_i32 = arith.constant 0 : i32
    %c0_i32_0 = arith.constant 0 : i32
    return %arg0, %c0_i32 : i32, i32
  }
  func.func @transform_3(%arg0: i32) -> (i32, i32) {
    %c0_i32 = arith.constant 0 : i32
    %c0_i32_0 = arith.constant 0 : i32
    %c0_i32_1 = arith.constant 0 : i32
    return %c0_i32, %c0_i32_0 : i32, i32
  }
  func.func @transform_4(%arg0: i32) -> (i32, i32) {
    %c0_i32 = arith.constant 0 : i32
    %c0_i32_0 = arith.constant 0 : i32
    %c0_i32_1 = arith.constant 0 : i32
    return %c0_i32, %c0_i32_0 : i32, i32
  }
  func.func @transform_5(%arg0: i32) -> (i32, i32) {
    %c0_i32 = arith.constant 0 : i32
    %c0_i32_0 = arith.constant 0 : i32
    %c0_i32_1 = arith.constant 0 : i32
    return %c0_i32, %c0_i32_0 : i32, i32
  }
}

</mosaic_0001>

<llo_original>
// kernel: tpu_custom_call.1
$region0: #{tpu_custom_call.1}
  #allocation0 [shape = 'u32[]', space=smem, size = 0x4, offset = 0x4, fixed_abs, tag = 'smem constant byte address 0x4 - core index']
  #allocation1 [shape = 'u32[144,128]{1,0:T(1,128)}', space=vmem, size = 0x12000, scoped, tag = 'internal scratch']
  #allocation2 [shape = 'f32[8,128]{1,0:T(8,128)}', space=vmem, size = 0x1000, scoped, tag = 'scratch operand']
  %s0 = inlined_call_operand.vmem [shape: s32[8,8,1], index: 0, kind: input, shape index: {}]
  %s1 = inlined_call_operand.vmem [shape: f32[8,8,1], index: 1, kind: input, shape index: {}]
  %s2 = inlined_call_operand.vmem [shape: bf16[128,128], index: 2, kind: input, shape index: {}]
  %s3 = inlined_call_operand.vmem [shape: bf16[128,128], index: 3, kind: input, shape index: {}]
  %s4 = inlined_call_operand.vmem [shape: f32[1,128], index: 4, kind: input, shape index: {}]
  %s5 = inlined_call_operand.hbm [shape: f32[8,128], index: 5, kind: output, shape index: {}]
  %s6 = sld [smem:[#allocation0]]
  $region38: #{tpu_custom_call.1} parent=0
    _
  %s8 = ssub.s32 1, %s6
  %s9 = scalar_select 0, %s8, %s6
  $region1: #{tpu_custom_call.1} parent=0
    #allocation3 [shape = 'u8[4096]{0}', space=vmem, size = 0x1000, scoped, tag = 'output window, operand 0, single buffered']
    #allocation4 [shape = 's32[1]{0}', space=sflag, size = 0x4, scoped, tag = 'scoped memory for tpu_custom_call.1']
    %10 = vsyncpa [#allocation4], 0
    // Predicated region
    $region2: #{tpu_custom_call.1} parent=1 // pred_check
      _
    $region3: #{tpu_custom_call.1} parent=1 // pred_check_branch
      %12 = sbr.rel (0) target = $region5
    $region4: #{tpu_custom_call.1} parent=1 // pred_region
      _
    $region5: #{tpu_custom_call.1} parent=1 // pred_fallthru
      _
    // Predicated region
    $region6: #{tpu_custom_call.1} parent=1 // pred_check
      _
    $region7: #{tpu_custom_call.1} parent=1 // pred_check_branch
      %14 = sbr.rel (0) target = $region9
    $region8: #{tpu_custom_call.1} parent=1 // pred_region
      _
    $region9: #{tpu_custom_call.1} parent=1 // pred_fallthru
      _
    // Predicated region
    $region10: #{tpu_custom_call.1} parent=1 // pred_check
      _
    $region11: #{tpu_custom_call.1} parent=1 // pred_check_branch
      %16 = sbr.rel (0) target = $region13
    $region12: #{tpu_custom_call.1} parent=1 // pred_region
      _
    $region13: #{tpu_custom_call.1} parent=1 // pred_fallthru
      _
    // Predicated region
    $region14: #{tpu_custom_call.1} parent=1 // pred_check
      _
    $region15: #{tpu_custom_call.1} parent=1 // pred_check_branch
      %18 = sbr.rel (0) target = $region17
    $region16: #{tpu_custom_call.1} parent=1 // pred_region
      _
    $region17: #{tpu_custom_call.1} parent=1 // pred_fallthru
      _
    // Predicated region
    $region18: #{tpu_custom_call.1} parent=1 // pred_check
      _
    $region19: #{tpu_custom_call.1} parent=1 // pred_check_branch
      %20 = sbr.rel (0) target = $region21
    $region20: #{tpu_custom_call.1} parent=1 // pred_region
      _
    $region21: #{tpu_custom_call.1} parent=1 // pred_fallthru
      _
    %p22 = scmp.eq.s32.totalorder 0, 0
    // Predicated region
    $region22: #{tpu_custom_call.1} parent=1 // pred_check
      %p23 = pneg %p22
    $region23: #{tpu_custom_call.1} parent=1 // pred_check_branch
      %25 = sbr.rel (%p23) target = $region25
    $region24: #{tpu_custom_call.1} parent=1 // pred_region
      %26 = vst [vmem:[#allocation2] sm:$0xff] 0.0
    $region25: #{tpu_custom_call.1} parent=1 // pred_fallthru
      _
    %s27 = smul.u32 0, 128
    %v28 = vlaneseq
    %v29 = vand.u32 %v28, 127
    %v30 = vstv %s27
    %v31 = vadd.s32 %v29, %v30
    %v32 = vld [vmem:[%s0] sm:$0xff]
    %v33 = vld [vmem:[%s1] sm:$0xff]
    %v34 = vmul.f32 %v33, 0.125
    %35 = vset.pattern.permute.xlu0 0
    %36 = vperm.xlu0 %35, %v32
    %v37 = vpop.permute.xlu0 %36
    %vm38 = vcmp.eq.s32.totalorder %v31, %v37
    %40 = vset.pattern.permute.xlu0 0
    %41 = vperm.xlu0 %40, %v34
    %v42 = vpop.permute.xlu0 %41
    %v44 = vsel %vm38, %v42, 0.0
    %v45 = vadd.f32 %v44, 0.0
    %s46 = scalar_lea.vmem %s0, 8
    %v47 = vld [vmem:[%s46] sm:$0xff]
    %s48 = scalar_lea.vmem %s1, 8
    %v49 = vld [vmem:[%s48] sm:$0xff]
    %v50 = vmul.f32 %v49, 0.125
    %51 = vset.pattern.permute.xlu0 0
    %52 = vperm.xlu0 %51, %v47
    %v53 = vpop.permute.xlu0 %52
    %vm54 = vcmp.eq.s32.totalorder %v31, %v53
    %56 = vset.pattern.permute.xlu0 0
    %57 = vperm.xlu0 %56, %v50
    %v58 = vpop.permute.xlu0 %57
    %v60 = vsel %vm54, %v58, 0.0
    %v61 = vadd.f32 %v45, %v60
    %s62 = scalar_lea.vmem %s0, 16
    %v63 = vld [vmem:[%s62] sm:$0xff]
    %s64 = scalar_lea.vmem %s1, 16
    %v65 = vld [vmem:[%s64] sm:$0xff]
    %v66 = vmul.f32 %v65, 0.125
    %67 = vset.pattern.permute.xlu0 0
    %68 = vperm.xlu0 %67, %v63
    %v69 = vpop.permute.xlu0 %68
    %vm70 = vcmp.eq.s32.totalorder %v31, %v69
    %72 = vset.pattern.permute.xlu0 0
    %73 = vperm.xlu0 %72, %v66
    %v74 = vpop.permute.xlu0 %73
    %v76 = vsel %vm70, %v74, 0.0
    %v77 = vadd.f32 %v61, %v76
    %s78 = scalar_lea.vmem %s0, 24
    %v79 = vld [vmem:[%s78] sm:$0xff]
    %s80 = scalar_lea.vmem %s1, 24
    %v81 = vld [vmem:[%s80] sm:$0xff]
    %v82 = vmul.f32 %v81, 0.125
    %83 = vset.pattern.permute.xlu0 0
    %84 = vperm.xlu0 %83, %v79
    %v85 = vpop.permute.xlu0 %84
    %vm86 = vcmp.eq.s32.totalorder %v31, %v85
    %88 = vset.pattern.permute.xlu0 0
    %89 = vperm.xlu0 %88, %v82
    %v90 = vpop.permute.xlu0 %89
    %v92 = vsel %vm86, %v90, 0.0
    %v93 = vadd.f32 %v77, %v92
    %s94 = scalar_lea.vmem %s0, 32
    %v95 = vld [vmem:[%s94] sm:$0xff]
    %s96 = scalar_lea.vmem %s1, 32
    %v97 = vld [vmem:[%s96] sm:$0xff]
    %v98 = vmul.f32 %v97, 0.125
    %99 = vset.pattern.permute.xlu0 0
    %100 = vperm.xlu0 %99, %v95
    %v101 = vpop.permute.xlu0 %100
    %vm102 = vcmp.eq.s32.totalorder %v31, %v101
    %104 = vset.pattern.permute.xlu0 0
    %105 = vperm.xlu0 %104, %v98
    %v106 = vpop.permute.xlu0 %105
    %v108 = vsel %vm102, %v106, 0.0
    %v109 = vadd.f32 %v93, %v108
    %s110 = scalar_lea.vmem %s0, 40
    %v111 = vld [vmem:[%s110] sm:$0xff]
    %s112 = scalar_lea.vmem %s1, 40
    %v113 = vld [vmem:[%s112] sm:$0xff]
    %v114 = vmul.f32 %v113, 0.125
    %115 = vset.pattern.permute.xlu0 0
    %116 = vperm.xlu0 %115, %v111
    %v117 = vpop.permute.xlu0 %116
    %vm118 = vcmp.eq.s32.totalorder %v31, %v117
    %120 = vset.pattern.permute.xlu0 0
    %121 = vperm.xlu0 %120, %v114
    %v122 = vpop.permute.xlu0 %121
    %v124 = vsel %vm118, %v122, 0.0
    %v125 = vadd.f32 %v109, %v124
    %s126 = scalar_lea.vmem %s0, 48
    %v127 = vld [vmem:[%s126] sm:$0xff]
    %s128 = scalar_lea.vmem %s1, 48
    %v129 = vld [vmem:[%s128] sm:$0xff]
    %v130 = vmul.f32 %v129, 0.125
    %131 = vset.pattern.permute.xlu0 0
    %132 = vperm.xlu0 %131, %v127
    %v133 = vpop.permute.xlu0 %132
    %vm134 = vcmp.eq.s32.totalorder %v31, %v133
    %136 = vset.pattern.permute.xlu0 0
    %137 = vperm.xlu0 %136, %v130
    %v138 = vpop.permute.xlu0 %137
    %v140 = vsel %vm134, %v138, 0.0
    %v141 = vadd.f32 %v125, %v140
    %s142 = scalar_lea.vmem %s0, 56
    %v143 = vld [vmem:[%s142] sm:$0xff]
    %s144 = scalar_lea.vmem %s1, 56
    %v145 = vld [vmem:[%s144] sm:$0xff]
    %v146 = vmul.f32 %v145, 0.125
    %147 = vset.pattern.permute.xlu0 0
    %148 = vperm.xlu0 %147, %v143
    %v149 = vpop.permute.xlu0 %148
    %vm150 = vcmp.eq.s32.totalorder %v31, %v149
    %152 = vset.pattern.permute.xlu0 0
    %153 = vperm.xlu0 %152, %v146
    %v154 = vpop.permute.xlu0 %153
    %v156 = vsel %vm150, %v154, 0.0
    %v157 = vadd.f32 %v141, %v156
    %v158 = vld [vmem:[#allocation2] sm:$0xff]
    %v159 = vpack.c.bf16 %v157, %v157
    %v160 = vld [vmem:[%s2] sm:$0xf]
    %v161 = vld [vmem:[%s2 + $0x4] sm:$0xf]
    %v162 = vld [vmem:[%s2 + $0x8] sm:$0xf]
    %v163 = vld [vmem:[%s2 + $0xc] sm:$0xf]
    %v164 = vld [vmem:[%s2 + $0x10] sm:$0xf]
    %v165 = vld [vmem:[%s2 + $0x14] sm:$0xf]
    %v166 = vld [vmem:[%s2 + $0x18] sm:$0xf]
    %v167 = vld [vmem:[%s2 + $0x1c] sm:$0xf]
    %v168 = vld [vmem:[%s2 + $0x20] sm:$0xf]
    %v169 = vld [vmem:[%s2 + $0x24] sm:$0xf]
    %v170 = vld [vmem:[%s2 + $0x28] sm:$0xf]
    %v171 = vld [vmem:[%s2 + $0x2c] sm:$0xf]
    %v172 = vld [vmem:[%s2 + $0x30] sm:$0xf]
    %v173 = vld [vmem:[%s2 + $0x34] sm:$0xf]
    %v174 = vld [vmem:[%s2 + $0x38] sm:$0xf]
    %v175 = vld [vmem:[%s2 + $0x3c] sm:$0xf]
    %v192 = vunpack.c.l.b16 %v160
    %v193 = vunpack.c.l.b16 %v161
    %v194 = vunpack.c.l.b16 %v162
    %v195 = vunpack.c.l.b16 %v163
    %v196 = vunpack.c.l.b16 %v164
    %v197 = vunpack.c.l.b16 %v165
    %v198 = vunpack.c.l.b16 %v166
    %v199 = vunpack.c.l.b16 %v167
    %v200 = vunpack.c.l.b16 %v168
    %v201 = vunpack.c.l.b16 %v169
    %v202 = vunpack.c.l.b16 %v170
    %v203 = vunpack.c.l.b16 %v171
    %v204 = vunpack.c.l.b16 %v172
    %v205 = vunpack.c.l.b16 %v173
    %v206 = vunpack.c.l.b16 %v174
    %v207 = vunpack.c.l.b16 %v175
    %v208 = vpack.c.b16 %v193, %v192
    %v209 = vpack.c.b16 %v195, %v194
    %v210 = vpack.c.b16 %v197, %v196
    %v211 = vpack.c.b16 %v199, %v198
    %v212 = vpack.c.b16 %v201, %v200
    %v213 = vpack.c.b16 %v203, %v202
    %v214 = vpack.c.b16 %v205, %v204
    %v215 = vpack.c.b16 %v207, %v206
    %224 = vmatprep.subr.bf16.mxu0 0
    %225 = vmatpush1.bf16.msra.mxu0 %v208
    %226 = vmatprep.subr.bf16.mxu0 0
    %227 = vmatpush1.bf16.msra.mxu0 %v209
    %228 = vmatprep.subr.bf16.mxu0 0
    %229 = vmatpush1.bf16.msra.mxu0 %v210
    %230 = vmatprep.subr.bf16.mxu0 0
    %231 = vmatpush1.bf16.msra.mxu0 %v211
    %232 = vmatprep.subr.bf16.mxu0 0
    %233 = vmatpush1.bf16.msra.mxu0 %v212
    %234 = vmatprep.subr.bf16.mxu0 0
    %235 = vmatpush1.bf16.msra.mxu0 %v213
    %236 = vmatprep.subr.bf16.mxu0 0
    %237 = vmatpush1.bf16.msra.mxu0 %v214
    %238 = vmatprep.subr.bf16.mxu0 0
    %239 = vmatpush1.bf16.msra.mxu0 %v215
    %240 = vmatprep.subr.bf16.mxu0 0
    %241 = vmatpush1.bf16.msra.mxu0 0
    %242 = vmatprep.subr.bf16.mxu0 0
    %243 = vmatpush1.bf16.msra.mxu0 0
    %244 = vmatprep.subr.bf16.mxu0 0
    %245 = vmatpush1.bf16.msra.mxu0 0
    %246 = vmatprep.subr.bf16.mxu0 0
    %247 = vmatpush1.bf16.msra.mxu0 0
    %248 = vmatprep.subr.bf16.mxu0 0
    %249 = vmatpush1.bf16.msra.mxu0 0
    %250 = vmatprep.subr.bf16.mxu0 0
    %251 = vmatpush1.bf16.msra.mxu0 0
    %252 = vmatprep.subr.bf16.mxu0 0
    %253 = vmatpush1.bf16.msra.mxu0 0
    %254 = vmatprep.subr.bf16.mxu0 0
    %255 = vmatpush1.bf16.msra.mxu0 0
    %256 = vmatprep.mubr.bf16.mxu0 0
    %257 = vmatmul.mubr.bf16.gmra.mrb[0].mxu0 %v159
    %v258 = vpop.f32.mrb[0].mxu0
    %v259 = vadd.f32 0.0, %v258
    %v260 = vpop.f32.mrb[0].mxu0
    %v261 = vpop.f32.mrb[0].mxu0
    %v262 = vpop.f32.mrb[0].mxu0
    %263 = vdwg.mxu0
    %v264 = vadd.f32 %v158, %v259
    %265 = vst [vmem:[#allocation2] sm:$0xff] %v264
    // Predicated region
    $region26: #{tpu_custom_call.1} parent=1 // pred_check
      %p266 = pneg %p22
    $region27: #{tpu_custom_call.1} parent=1 // pred_check_branch
      %268 = sbr.rel (%p266) target = $region29
    $region28: #{tpu_custom_call.1} parent=1 // pred_region
      %v269 = vld [vmem:[#allocation2] sm:$0xff]
      %v270 = vpack.c.bf16 %v269, %v269
      %v271 = vld [vmem:[%s3] sm:$0xf]
      %v272 = vld [vmem:[%s3 + $0x4] sm:$0xf]
      %v273 = vld [vmem:[%s3 + $0x8] sm:$0xf]
      %v274 = vld [vmem:[%s3 + $0xc] sm:$0xf]
      %v275 = vld [vmem:[%s3 + $0x10] sm:$0xf]
      %v276 = vld [vmem:[%s3 + $0x14] sm:$0xf]
      %v277 = vld [vmem:[%s3 + $0x18] sm:$0xf]
      %v278 = vld [vmem:[%s3 + $0x1c] sm:$0xf]
      %v279 = vld [vmem:[%s3 + $0x20] sm:$0xf]
      %v280 = vld [vmem:[%s3 + $0x24] sm:$0xf]
      %v281 = vld [vmem:[%s3 + $0x28] sm:$0xf]
      %v282 = vld [vmem:[%s3 + $0x2c] sm:$0xf]
      %v283 = vld [vmem:[%s3 + $0x30] sm:$0xf]
      %v284 = vld [vmem:[%s3 + $0x34] sm:$0xf]
      %v285 = vld [vmem:[%s3 + $0x38] sm:$0xf]
      %v286 = vld [vmem:[%s3 + $0x3c] sm:$0xf]
      %v287 = vld [vmem:[%s4] sm:$0x1]
      %v289 = vlaneseq
      %v290 = vshrl.u32 %v289, 7
      %v291 = vsub.s32 0, %v290
      %v292 = vrot.slane %v287, %v291
      %v310 = vunpack.c.l.b16 %v271
      %v311 = vunpack.c.l.b16 %v272
      %v312 = vunpack.c.l.b16 %v273
      %v313 = vunpack.c.l.b16 %v274
      %v314 = vunpack.c.l.b16 %v275
      %v315 = vunpack.c.l.b16 %v276
      %v316 = vunpack.c.l.b16 %v277
      %v317 = vunpack.c.l.b16 %v278
      %v318 = vunpack.c.l.b16 %v279
      %v319 = vunpack.c.l.b16 %v280
      %v320 = vunpack.c.l.b16 %v281
      %v321 = vunpack.c.l.b16 %v282
      %v322 = vunpack.c.l.b16 %v283
      %v323 = vunpack.c.l.b16 %v284
      %v324 = vunpack.c.l.b16 %v285
      %v325 = vunpack.c.l.b16 %v286
      %v326 = vpack.c.b16 %v311, %v310
      %v327 = vpack.c.b16 %v313, %v312
      %v328 = vpack.c.b16 %v315, %v314
      %v329 = vpack.c.b16 %v317, %v316
      %v330 = vpack.c.b16 %v319, %v318
      %v331 = vpack.c.b16 %v321, %v320
      %v332 = vpack.c.b16 %v323, %v322
      %v333 = vpack.c.b16 %v325, %v324
      %342 = vmatprep.subr.bf16.mxu0 0
      %343 = vmatpush1.bf16.msra.mxu0 %v326
      %344 = vmatprep.subr.bf16.mxu0 0
      %345 = vmatpush1.bf16.msra.mxu0 %v327
      %346 = vmatprep.subr.bf16.mxu0 0
      %347 = vmatpush1.bf16.msra.mxu0 %v328
      %348 = vmatprep.subr.bf16.mxu0 0
      %349 = vmatpush1.bf16.msra.mxu0 %v329
      %350 = vmatprep.subr.bf16.mxu0 0
      %351 = vmatpush1.bf16.msra.mxu0 %v330
      %352 = vmatprep.subr.bf16.mxu0 0
      %353 = vmatpush1.bf16.msra.mxu0 %v331
      %354 = vmatprep.subr.bf16.mxu0 0
      %355 = vmatpush1.bf16.msra.mxu0 %v332
      %356 = vmatprep.subr.bf16.mxu0 0
      %357 = vmatpush1.bf16.msra.mxu0 %v333
      %358 = vmatprep.subr.bf16.mxu0 0
      %359 = vmatpush1.bf16.msra.mxu0 0
      %360 = vmatprep.subr.bf16.mxu0 0
      %361 = vmatpush1.bf16.msra.mxu0 0
      %362 = vmatprep.subr.bf16.mxu0 0
      %363 = vmatpush1.bf16.msra.mxu0 0
      %364 = vmatprep.subr.bf16.mxu0 0
      %365 = vmatpush1.bf16.msra.mxu0 0
      %366 = vmatprep.subr.bf16.mxu0 0
      %367 = vmatpush1.bf16.msra.mxu0 0
      %368 = vmatprep.subr.bf16.mxu0 0
      %369 = vmatpush1.bf16.msra.mxu0 0
      %370 = vmatprep.subr.bf16.mxu0 0
      %371 = vmatpush1.bf16.msra.mxu0 0
      %372 = vmatprep.subr.bf16.mxu0 0
      %373 = vmatpush1.bf16.msra.mxu0 0
      %374 = vmatprep.mubr.bf16.mxu0 0
      %375 = vmatmul.mubr.bf16.gmra.mrb[0].mxu0 %v270
      %v376 = vpop.f32.mrb[0].mxu0
      %v377 = vadd.f32 %v292, %v376
      %v378 = vpop.f32.mrb[0].mxu0
      %v379 = vpop.f32.mrb[0].mxu0
      %v380 = vpop.f32.mrb[0].mxu0
      %381 = vdwg.mxu0
      %382 = vst [vmem:[#allocation3] sm:$0xff] %v377
    $region29: #{tpu_custom_call.1} parent=1 // pred_fallthru
      _
    // Predicated region
    $region30: #{tpu_custom_call.1} parent=1 // pred_check
      _
    $region31: #{tpu_custom_call.1} parent=1 // pred_check_branch
      %384 = sbr.rel (0) target = $region33
    $region32: #{tpu_custom_call.1} parent=1 // pred_region
      %s386 = ssub.s32 128, 128
      %387 = vsyncadd [#allocation4], %s386
      %s389 = sshll.u32 [#allocation3], 4
      %s390 = int_to_ptr.vmem [resolvable:$true] %s389
      %392 = dma.vmem_to_hbm [thread:$0]  %s390, 128, %s5, [#allocation4]
    $region33: #{tpu_custom_call.1} parent=1 // pred_fallthru
      _
    // Predicated region
    $region34: #{tpu_custom_call.1} parent=1 // pred_check
      _
    $region35: #{tpu_custom_call.1} parent=1 // pred_check_branch
      %394 = sbr.rel (0) target = $region37
    $region36: #{tpu_custom_call.1} parent=1 // pred_region
      %395 = dma.done [#allocation4], 128
    $region37: #{tpu_custom_call.1} parent=1 // pred_fallthru
      _
    %396 = vsyncpa [#allocation4], 1

</llo_original>
